<compile_context>
chip_gen: v6e
topology: v6e:2x2x1
jax: 0.10.0
libtpu: 0.0.40
codegen_flags: <defaults>
</compile_context>

<pallas_src>
import jax
import jax.numpy as jnp
from jax import lax
from jax.experimental import pallas as pl
from jax.experimental.pallas import tpu as pltpu

_EPS = 1e-5


def _round_up(n, m):
    return ((n + m - 1) // m) * m


def _full_batchnorm_kernel(params_ref, x_ref, o_ref):
    # params_ref: (2, tile_d) float32; row 0 = mean, row 1 = 1/sqrt(var + eps).
    mean = params_ref[0:1, :]                    # (1, tile_d) -> broadcasts over rows
    scale = params_ref[1:2, :]
    # x promotes to f32 against the f32 stats; cast back only on the store.
    o_ref[...] = ((x_ref[...] - mean) * scale).astype(o_ref.dtype)


def full_batch_norm(x, var, mean, *,
                    max_block_bytes=4 << 20,     # per x/out tile (double-buffered)
                    vmem_limit_bytes=32 << 20):  # fits v7x 64 MiB, > v5e 16 MiB default
    """x: (..., D); var, mean: (D,). Returns (x - mean) / sqrt(var + 1e-5)."""
    orig_shape = x.shape
    D = orig_shape[-1]
    x2 = x.reshape(-1, D)
    N = x2.shape[0]
    itemsize = x2.dtype.itemsize

    # Precompute inv_std in f32 (faithful to the PyTorch registered buffer); pack with
    # mean into one resident (2, D) f32 array.
    params = jnp.stack(
        [mean.astype(jnp.float32), lax.rsqrt(var.astype(jnp.float32) + _EPS)], axis=0)

    sublane = max(8, 32 // itemsize)             # 8 f32, 16 bf16/f16, 32 int8/fp8
    d_lanes = _round_up(D, 128)                  # lane-padded width used only for sizing
    rows_fit = max(1, max_block_bytes // (d_lanes * itemsize))

    if rows_fit >= sublane or N <= rows_fit:
        # Common case: full feature dim per block (lane-dense, unmasked stores);
        # 1-D grid over row tiles so the megacore-sharded axis is the row axis.
        tile_d = D
        target_rows = _round_up(pl.cdiv(N, 4), sublane)   # >= ~4 steps for pipelining
        tile_n = max(sublane, min((rows_fit // sublane) * sublane, target_rows))
        if tile_n >= N:
            tile_n = N                                    # tiny input: one full block
        grid = (pl.cdiv(N, tile_n),)                      # partial trailing block OK
        in_specs = [
            pl.BlockSpec((2, tile_d), lambda i: (0, 0)),        # resident params
            pl.BlockSpec((tile_n, tile_d), lambda i: (i, 0)),   # streamed row tiles
        ]
        out_specs = pl.BlockSpec((tile_n, tile_d), lambda i: (i, 0))
        dim_sem = ("parallel",)
    else:
        # Very wide D: tile the feature dim too (multiple of 128, bounded padding
        # waste via cdiv); rows lead the grid for megacore sharding. Params re-DMA per
        # feature tile is negligible (KBs vs MiB x tiles).
        tile_n = N if N < sublane else sublane
        n_feat_tiles = max(1, pl.cdiv(d_lanes * tile_n * itemsize, max_block_bytes))
        tile_d = min(d_lanes, _round_up(pl.cdiv(d_lanes, n_feat_tiles), 128))
        grid = (pl.cdiv(N, tile_n), pl.cdiv(D, tile_d))   # partial edge blocks OK
        in_specs = [
            pl.BlockSpec((2, tile_d), lambda i, j: (0, j)),
            pl.BlockSpec((tile_n, tile_d), lambda i, j: (i, j)),
        ]
        out_specs = pl.BlockSpec((tile_n, tile_d), lambda i, j: (i, j))
        dim_sem = ("parallel", "parallel")

    out = pl.pallas_call(
        _full_batchnorm_kernel,
        out_shape=jax.ShapeDtypeStruct((N, D), x2.dtype),
        grid_spec=pltpu.PrefetchScalarGridSpec(
            num_scalar_prefetch=0,
            grid=grid,
            in_specs=in_specs,
            out_specs=out_specs,
        ),
        compiler_params=pltpu.CompilerParams(
            dimension_semantics=dim_sem,
            vmem_limit_bytes=vmem_limit_bytes,
        ),
    )(params, x2)

    return out.reshape(orig_shape)


if __name__ == "__main__":
    key = jax.random.PRNGKey(0)
    k_x, k_var, k_mean = jax.random.split(key, 3)

    def ref_fn(x, var, mean):
        inv_std = 1.0 / jnp.sqrt(var.astype(jnp.float32) + _EPS)
        y = (x.astype(jnp.float32) - mean.astype(jnp.float32)) * inv_std
        return y.astype(x.dtype)

    # Case 1: small (batch, features) f32, common lane-dense path.
    N, D = 16, 256
    x = jax.random.normal(k_x, (N, D), dtype=jnp.float32)
    var = jax.nn.softplus(jax.random.normal(k_var, (D,), dtype=jnp.float32))   # positive
    mean = jax.random.normal(k_mean, (D,), dtype=jnp.float32)
    out = jax.block_until_ready(full_batch_norm(x, var, mean))
    assert jnp.allclose(out, ref_fn(x, var, mean), atol=1e-5, rtol=1e-5), "case1 mismatch"

    # Case 2: ragged N with multiple pipelined row tiles (partial trailing row block).
    N2, D2 = 37, 384
    x_b = jax.random.normal(k_x, (N2, D2), dtype=jnp.float32)
    var_b = jax.nn.softplus(jax.random.normal(k_var, (D2,), dtype=jnp.float32))
    mean_b = jax.random.normal(k_mean, (D2,), dtype=jnp.float32)
    out_b = jax.block_until_ready(
        full_batch_norm(x_b, var_b, mean_b, max_block_bytes=8 * D2 * 4))
    assert jnp.allclose(out_b, ref_fn(x_b, var_b, mean_b), atol=1e-5, rtol=1e-5), \
        "case2 mismatch"

    # Case 3: wide-D branch (feature-tiled, ragged feature tail), bf16 data / f32 stats.
    N3, D3 = 12, 520
    x_c = jax.random.normal(k_x, (N3, D3), dtype=jnp.float32).astype(jnp.bfloat16)
    var_c = jax.nn.softplus(jax.random.normal(k_var, (D3,), dtype=jnp.float32))
    mean_c = jax.random.normal(k_mean, (D3,), dtype=jnp.float32)
    out_c = jax.block_until_ready(
        full_batch_norm(x_c, var_c, mean_c, max_block_bytes=4096))
    ref_c = ref_fn(x_c, var_c, mean_c)
    assert jnp.allclose(out_c.astype(jnp.float32), ref_c.astype(jnp.float32),
                        atol=3e-2, rtol=3e-2), "case3 mismatch"

    print("KERNEL_OK")
</pallas_src>

<mosaic_0001>
module attributes {stable_mosaic.version = 11 : i64} {
  func.func @_full_batchnorm_kernel(%arg0: i32, %arg1: memref<2x256xf32, #tpu.memory_space<vmem>>, %arg2: memref<8x256xf32, #tpu.memory_space<vmem>>, %arg3: memref<8x256xf32, #tpu.memory_space<vmem>>) attributes {dimension_semantics = [#tpu.dimension_semantics<parallel>], iteration_bounds = array<i64: 2>, scalar_prefetch = 0 : i64, scratch_operands = 0 : i64, tpu.core_type = #tpu.core_type<tc>, window_params = [{pipeline_mode = #tpu.pipeline_mode<synchronous>, transform_indices = @transform_0, window_bounds = array<i64: 2, 256>}, {transform_indices = @transform_1, window_bounds = array<i64: 8, 256>}, {transform_indices = @transform_2, window_bounds = array<i64: 8, 256>}]} {
    %c0 = arith.constant 0 : index
    %c0_0 = arith.constant 0 : index
    %0 = vector.load %arg1[%c0, %c0_0] : memref<2x256xf32, #tpu.memory_space<vmem>>, vector<1x256xf32>
    %c1 = arith.constant 1 : index
    %c0_1 = arith.constant 0 : index
    %1 = vector.load %arg1[%c1, %c0_1] : memref<2x256xf32, #tpu.memory_space<vmem>>, vector<1x256xf32>
    %c0_2 = arith.constant 0 : index
    %c0_3 = arith.constant 0 : index
    %2 = vector.load %arg2[%c0_2, %c0_3] : memref<8x256xf32, #tpu.memory_space<vmem>>, vector<8x256xf32>
    %3 = vector.broadcast %0 : vector<1x256xf32> to vector<8x256xf32>
    %4 = arith.subf %2, %3 : vector<8x256xf32>
    %5 = vector.broadcast %1 : vector<1x256xf32> to vector<8x256xf32>
    %6 = arith.mulf %4, %5 : vector<8x256xf32>
    %c0_4 = arith.constant 0 : index
    %c0_5 = arith.constant 0 : index
    %7 = vector.load %arg3[%c0_4, %c0_5] : memref<8x256xf32, #tpu.memory_space<vmem>>, vector<8x256xf32>
    tpu.vector_store %arg3[%c0_4, %c0_5], %6 {strides = array<i32>} : memref<8x256xf32, #tpu.memory_space<vmem>>, vector<8x256xf32>,
    return
  }
  func.func @transform_0(%arg0: i32) -> (i32, i32) {
    %c0_i32 = arith.constant 0 : i32
    %c0_i32_0 = arith.constant 0 : i32
    %c0_i32_1 = arith.constant 0 : i32
    return %c0_i32, %c0_i32_0 : i32, i32
  }
  func.func @transform_1(%arg0: i32) -> (i32, i32) {
    %c0_i32 = arith.constant 0 : i32
    %c0_i32_0 = arith.constant 0 : i32
    return %arg0, %c0_i32 : i32, i32
  }
  func.func @transform_2(%arg0: i32) -> (i32, i32) {
    %c0_i32 = arith.constant 0 : i32
    %c0_i32_0 = arith.constant 0 : i32
    return %arg0, %c0_i32 : i32, i32
  }
}

</mosaic_0001>

<llo_original>
// kernel: tpu_custom_call.1
$region0: #{tpu_custom_call.1}
  #allocation0 [shape = 'u32[]', space=smem, size = 0x4, offset = 0x4, fixed_abs, tag = 'smem constant byte address 0x4 - core index']
  #allocation1 [shape = 'u32[144,128]{1,0:T(1,128)}', space=vmem, size = 0x12000, scoped, tag = 'internal scratch']
  %s0 = inlined_call_operand.hbm [shape: f32[2,256], index: 0, kind: input, shape index: {}]
  %s1 = inlined_call_operand.hbm [shape: f32[16,256], index: 1, kind: input, shape index: {}]
  %s2 = inlined_call_operand.hbm [shape: f32[16,256], index: 2, kind: output, shape index: {}]
  %s3 = sld [smem:[#allocation0]]
  $region49: #{tpu_custom_call.1} parent=0
    _
  %s5 = ssub.s32 1, %s3
  %s6 = scalar_select 0, %s5, %s3
  $region1: #{tpu_custom_call.1} parent=0
    #allocation2 [shape = 'u8[2048]{0}', space=vmem, size = 0x800, scoped, tag = 'input window, operand 0, single buffered']
    #allocation3 [shape = 's32[2]{0}', space=sflag, size = 0x8, scoped, tag = 'scoped memory for tpu_custom_call.1']
    #allocation4 [shape = 's32[2]{0}', space=sflag, size = 0x8, scoped, tag = 'scoped memory for tpu_custom_call.1']
    #allocation5 [shape = 'u8[16384]{0}', space=vmem, size = 0x4000, scoped, tag = 'input window, operand 1']
    #allocation6 [shape = 's32[2]{0}', space=sflag, size = 0x8, scoped, tag = 'scoped memory for tpu_custom_call.1']
    #allocation7 [shape = 'u8[16384]{0}', space=vmem, size = 0x4000, scoped, tag = 'output window, operand 0']
    %7 = vsyncpa [#allocation3], 0
    %8 = vsyncpa [#allocation6], 0
    %s9 = scalar_lea.sflag [#allocation6], 1
    %10 = vsyncpa %s9, 0
    %11 = vsyncpa [#allocation4], 0
    %s12 = scalar_lea.sflag [#allocation4], 1
    %13 = vsyncpa %s12, 0
    loop: start=0, step=1, limit=4
    $region2: #{tpu_custom_call.1} parent=1 // loop_pre_header
      _
    $region3: #{tpu_custom_call.1} parent=1 // loop_header
      %s15 = sphi 0, %s19
      %p16 = scmp.ge.s32.totalorder %s15, 4
      %s23 = sphi 0, %s23
      %s25 = sphi 0, %s23
      %s26 = sphi 0, %s25
      %s40 = sphi 0, %s26
      %s46 = sphi 0, %s48
      %s49 = sphi 0, %s46
      %s50 = sphi 0, %s49
      %s66 = sphi 0, %s50
      %s72 = sphi 0, %s74
      %s75 = sphi 0, %s72
      %s76 = sphi 0, %s75
      %s92 = sphi 0, %s76
    $region4: #{tpu_custom_call.1} parent=1 // loop_header_branch
      %18 = sbr.rel (%p16) target = $region8
    $region5: #{tpu_custom_call.1} parent=1 // loop_body
      %s20 = ssub.s32 %s15, 1
      %s21 = ssub.s32 %s15, 2
      %s22 = sadd.s32 %s15, 1
      %s24 = sadd.s32 %s23, 1
      %p27 = scmp.eq.s32.totalorder %s15, 1
      %p28 = scmp.ne.s32.totalorder %s23, %s25
      %p29 = scmp.eq.s32.totalorder %s15, 0
      %p30 = por %p28, %p29
      %p31 = scmp.ne.s32.totalorder %s23, %s25
      %p32 = scmp.eq.s32.totalorder %s20, 1
      %p33 = por %p31, %p32
      %p34 = scmp.ne.s32.totalorder %s25, %s26
      %p35 = scmp.eq.s32.totalorder %s20, 0
      %p36 = por %p34, %p35
      %p37 = scmp.ne.s32.totalorder %s25, %s26
      %p38 = scmp.eq.s32.totalorder %s21, 1
      %p39 = por %p37, %p38
      %p41 = scmp.ne.s32.totalorder %s26, %s40
      %p42 = scmp.eq.s32.totalorder %s21, 0
      %p43 = por %p41, %p42
      %s44 = ssub.s32 %s15, %s22
      %p45 = scmp.eq.s32.totalorder %s44, 0
      %s47 = sadd.s32 %s46, 1
      %s48 = scalar_select %p45, %s46, %s47
      %p51 = pneg %p45
      %p52 = scmp.eq.s32.totalorder %s15, 1
      %p53 = por %p51, %p52
      %p54 = scmp.ne.s32.totalorder %s46, %s49
      %p55 = scmp.eq.s32.totalorder %s15, 0
      %p56 = por %p54, %p55
      %p57 = scmp.ne.s32.totalorder %s46, %s49
      %p58 = scmp.eq.s32.totalorder %s20, 1
      %p59 = por %p57, %p58
      %p60 = scmp.ne.s32.totalorder %s49, %s50
      %p61 = scmp.eq.s32.totalorder %s20, 0
      %p62 = por %p60, %p61
      %p63 = scmp.ne.s32.totalorder %s49, %s50
      %p64 = scmp.eq.s32.totalorder %s21, 1
      %p65 = por %p63, %p64
      %p67 = scmp.ne.s32.totalorder %s50, %s66
      %p68 = scmp.eq.s32.totalorder %s21, 0
      %p69 = por %p67, %p68
      %s70 = ssub.s32 %s15, %s22
      %p71 = scmp.eq.s32.totalorder %s70, 0
      %s73 = sadd.s32 %s72, 1
      %s74 = scalar_select %p71, %s72, %s73
      %p77 = pneg %p71
      %p78 = scmp.eq.s32.totalorder %s15, 1
      %p79 = por %p77, %p78
      %p80 = scmp.ne.s32.totalorder %s72, %s75
      %p81 = scmp.eq.s32.totalorder %s15, 0
      %p82 = por %p80, %p81
      %p83 = scmp.ne.s32.totalorder %s72, %s75
      %p84 = scmp.eq.s32.totalorder %s20, 1
      %p85 = por %p83, %p84
      %p86 = scmp.ne.s32.totalorder %s75, %s76
      %p87 = scmp.eq.s32.totalorder %s20, 0
      %p88 = por %p86, %p87
      %p89 = scmp.ne.s32.totalorder %s75, %s76
      %p90 = scmp.eq.s32.totalorder %s21, 1
      %p91 = por %p89, %p90
      %p93 = scmp.ne.s32.totalorder %s76, %s92
      %p94 = scmp.eq.s32.totalorder %s21, 0
      %p95 = por %p93, %p94
      %p96 = scmp.le.s32.totalorder 1, %s15
      %p97 = scmp.lt.s32.totalorder %s15, 3
      %p98 = pnand %p96, %p97
      %p99 = pneg %p98
      // Predicated region
      $region9: #{tpu_custom_call.1} parent=5 // pred_check
        _
      $region10: #{tpu_custom_call.1} parent=5 // pred_check_branch
        %101 = sbr.rel (%p98) target = $region12
      $region11: #{tpu_custom_call.1} parent=5 // pred_region
        %s102 = ssub.s32 %s15, 1
        // Predicated region
        $region13: #{tpu_custom_call.1} parent=11 // pred_check
          %p103 = pneg %p36
        $region14: #{tpu_custom_call.1} parent=11 // pred_check_branch
          %105 = sbr.rel (%p103) target = $region16
        $region15: #{tpu_custom_call.1} parent=11 // pred_region
          %s107 = ssub.s32 64, 64
          %108 = vsyncadd [#allocation3], %s107
          %s110 = sshll.u32 [#allocation2], 4
          %s111 = int_to_ptr.vmem [resolvable:$true] %s110
          %113 = dma.hbm_to_vmem [thread:$0]  %s0, 64, %s111, [#allocation3]
        $region16: #{tpu_custom_call.1} parent=11 // pred_fallthru
          _
      $region12: #{tpu_custom_call.1} parent=5 // pred_fallthru
        _
      %p114 = scmp.lt.s32.totalorder %s15, 2
      // Predicated region
      $region17: #{tpu_custom_call.1} parent=5 // pred_check
        %p115 = pneg %p114
      $region18: #{tpu_custom_call.1} parent=5 // pred_check_branch
        %117 = sbr.rel (%p115) target = $region20
      $region19: #{tpu_custom_call.1} parent=5 // pred_region
        // Predicated region
        $region21: #{tpu_custom_call.1} parent=19 // pred_check
          %p118 = pneg %p56
        $region22: #{tpu_custom_call.1} parent=19 // pred_check_branch
          %120 = sbr.rel (%p118) target = $region24
        $region23: #{tpu_custom_call.1} parent=19 // pred_region
          %s121 = sand.u32 %s46, 1
          %s122 = scalar_lea.sflag [#allocation6], %s121
          %s123 = sand.u32 %s46, 1
          %s124 = smul.addr %s123, 16
          %s125 = scalar_lea.vmem [#allocation5], %s124
          %s127 = ssub.s32 256, 256
          %128 = vsyncadd %s122, %s127
          %s129 = smul.addr %s15, 2
          %s130 = smul.addr %s129, 128
          %s131 = scalar_lea.hbm %s1, %s130
          %s133 = sshll.u32 %s125, 4
          %s134 = int_to_ptr.vmem [resolvable:$true] %s133
          %136 = dma.hbm_to_vmem [thread:$0]  %s131, 256, %s134, %s122
        $region24: #{tpu_custom_call.1} parent=19 // pred_fallthru
          _
      $region20: #{tpu_custom_call.1} parent=5 // pred_fallthru
        _
      %p137 = scmp.le.s32.totalorder 1, %s15
      %p138 = scmp.lt.s32.totalorder %s15, 3
      %p139 = pnand %p137, %p138
      %p140 = pneg %p139
      // Predicated region
      $region25: #{tpu_custom_call.1} parent=5 // pred_check
        _
      $region26: #{tpu_custom_call.1} parent=5 // pred_check_branch
        %142 = sbr.rel (%p139) target = $region28
      $region27: #{tpu_custom_call.1} parent=5 // pred_region
        %s143 = ssub.s32 %s15, 1
        // Predicated region
        $region29: #{tpu_custom_call.1} parent=27 // pred_check
          %p144 = pneg %p36
        $region30: #{tpu_custom_call.1} parent=27 // pred_check_branch
          %146 = sbr.rel (%p144) target = $region32
        $region31: #{tpu_custom_call.1} parent=27 // pred_region
          %147 = dma.done [#allocation3], 64
        $region32: #{tpu_custom_call.1} parent=27 // pred_fallthru
          _
        %s148 = sand.u32 %s49, 1
        %s149 = scalar_lea.sflag [#allocation6], %s148
        %s150 = sand.u32 %s49, 1
        %s151 = smul.addr %s150, 16
        %s152 = scalar_lea.vmem [#allocation5], %s151
        // Predicated region
        $region33: #{tpu_custom_call.1} parent=27 // pred_check
          %p153 = pneg %p62
        $region34: #{tpu_custom_call.1} parent=27 // pred_check_branch
          %155 = sbr.rel (%p153) target = $region36
        $region35: #{tpu_custom_call.1} parent=27 // pred_region
          %156 = dma.done %s149, 256
        $region36: #{tpu_custom_call.1} parent=27 // pred_fallthru
          _
        %p157 = pneg %p36
        %p158 = pneg %p33
        %s159 = sand.u32 %s49, 1
        %s160 = scalar_lea.sflag [#allocation6], %s159
        %s161 = sand.u32 %s49, 1
        %s162 = smul.addr %s161, 16
        %s163 = scalar_lea.vmem [#allocation5], %s162
        %p164 = pneg %p62
        %p165 = pneg %p59
        %p166 = pneg %p88
        %p167 = pneg %p85
        %s168 = sand.u32 %s75, 1
        %s169 = scalar_lea.sflag [#allocation4], %s168
        %s170 = sand.u32 %s75, 1
        %s171 = smul.addr %s170, 16
        %s172 = scalar_lea.vmem [#allocation7], %s171
        %v173 = vld [vmem:[#allocation2] ss:$2 sm:$0x3]
        %s174 = scalar_lea.vmem [#allocation2], 1
        %v175 = vld [vmem:[%s174] ss:$2 sm:$0x3]
        %v176 = vld [vmem:[%s152] sm:$0xff]
        %v177 = vld [vmem:[%s152 + $0x8] sm:$0xff]
        %v179 = vlaneseq
        %v180 = vshrl.u32 %v179, 7
        %v181 = vsub.s32 0, %v180
        %v182 = vrot.slane %v173, %v181
        %v183 = vlaneseq
        %v184 = vshrl.u32 %v183, 7
        %v185 = vsub.s32 1, %v184
        %v186 = vrot.slane %v173, %v185
        %v189 = vsub.f32 %v176, %v182
        %v190 = vsub.f32 %v177, %v186
        %v192 = vlaneseq
        %v193 = vshrl.u32 %v192, 7
        %v194 = vsub.s32 0, %v193
        %v195 = vrot.slane %v175, %v194
        %v196 = vlaneseq
        %v197 = vshrl.u32 %v196, 7
        %v198 = vsub.s32 1, %v197
        %v199 = vrot.slane %v175, %v198
        %v202 = vmul.f32 %v189, %v195
        %v203 = vmul.f32 %v190, %v199
        %204 = vst [vmem:[%s172] sm:$0xff] %v202
        %205 = vst [vmem:[%s172 + $0x8] sm:$0xff] %v203
        %s206 = sand.u32 %s75, 1
        %s207 = scalar_lea.sflag [#allocation4], %s206
        %s208 = sand.u32 %s75, 1
        %s209 = smul.addr %s208, 16
        %s210 = scalar_lea.vmem [#allocation7], %s209
        // Predicated region
        $region37: #{tpu_custom_call.1} parent=27 // pred_check
          %p211 = pneg %p85
        $region38: #{tpu_custom_call.1} parent=27 // pred_check_branch
          %213 = sbr.rel (%p211) target = $region40
        $region39: #{tpu_custom_call.1} parent=27 // pred_region
          %s215 = ssub.s32 256, 256
          %216 = vsyncadd %s207, %s215
          %s217 = smul.addr %s20, 2
          %s218 = smul.addr %s217, 128
          %s219 = scalar_lea.hbm %s2, %s218
          %s221 = sshll.u32 %s210, 4
          %s222 = int_to_ptr.vmem [resolvable:$true] %s221
          %224 = dma.vmem_to_hbm [thread:$0]  %s222, 256, %s219, %s207
        $region40: #{tpu_custom_call.1} parent=27 // pred_fallthru
          _
      $region28: #{tpu_custom_call.1} parent=5 // pred_fallthru
        _
      %p225 = scmp.le.s32.totalorder 2, %s15
      // Predicated region
      $region41: #{tpu_custom_call.1} parent=5 // pred_check
        %p226 = pneg %p225
      $region42: #{tpu_custom_call.1} parent=5 // pred_check_branch
        %228 = sbr.rel (%p226) target = $region44
      $region43: #{tpu_custom_call.1} parent=5 // pred_region
        %s229 = ssub.s32 %s15, 2
        // Predicated region
        $region45: #{tpu_custom_call.1} parent=43 // pred_check
          %p230 = pneg %p91
        $region46: #{tpu_custom_call.1} parent=43 // pred_check_branch
          %232 = sbr.rel (%p230) target = $region48
        $region47: #{tpu_custom_call.1} parent=43 // pred_region
          %s233 = sand.u32 %s76, 1
          %s234 = scalar_lea.sflag [#allocation4], %s233
          %s235 = sand.u32 %s76, 1
          %s236 = smul.addr %s235, 16
          %s237 = scalar_lea.vmem [#allocation7], %s236
          %238 = dma.done %s234, 256
        $region48: #{tpu_custom_call.1} parent=43 // pred_fallthru
          _
      $region44: #{tpu_custom_call.1} parent=5 // pred_fallthru
        _
    $region6: #{tpu_custom_call.1} parent=1 // loop_footer
      %s19 = sadd.s32 1, %s15
    $region7: #{tpu_custom_call.1} parent=1 // loop_footer_branch
      %14 = sbr.rel target = $region3
    $region8: #{tpu_custom_call.1} parent=1 // loop_exit
      _
    %239 = vsyncpa [#allocation3], 1
    %s240 = scalar_lea.sflag [#allocation3], 1
    %241 = vsyncpa %s240, 1
    %242 = vsyncpa [#allocation6], 1
    %s243 = scalar_lea.sflag [#allocation6], 1
    %244 = vsyncpa %s243, 1
    %245 = vsyncpa [#allocation4], 1
    %s246 = scalar_lea.sflag [#allocation4], 1
    %247 = vsyncpa %s246, 1

</llo_original>
